<compile_context>
chip_gen: v7x
topology: tpu7x:2x2x1
jax: 0.10.0
libtpu: 0.0.40
codegen_flags: <defaults>
</compile_context>

<pallas_src>
import functools
import math

import jax
import jax.numpy as jnp
from jax.experimental import pallas as pl
from jax.experimental.pallas import tpu as pltpu


def _scoring_kernel(h_ref, q_ref, out_ref, *, inv_sqrt_dk):
    # h_ref: (TB, S, D), q_ref: (TB, D), out_ref: (TB, S)
    TB, S, D = h_ref.shape
    # Fold 1/sqrt(D) into the small q tile once per grid step (cheap vs.
    # dividing every score; f32 accumulation keeps rounding benign).
    q = q_ref[...].astype(jnp.float32) * inv_sqrt_dk               # (TB, D) f32

    if D > 128 and D % 128 == 0:
        # VALU-first reduction: combine the D/128 lane chunks with plain
        # vector adds (the 4-wide VALU slots have slack), leaving exactly one
        # cross-lane XLU reduce per output group.  Also bounds the f32
        # temporary to (TB, S, 128) instead of (TB, S, D).
        acc = h_ref[:, :, 0:128] * q[:, None, 0:128]               # f32
        for c in range(1, D // 128):
            lo = c * 128
            acc = acc + h_ref[:, :, lo:lo + 128] * q[:, None, lo:lo + 128]
        scores = jnp.sum(acc, axis=-1)                             # (TB, S)
    else:
        # Batched row-dot: scores[t, s] = sum_d h[t, s, d] * q[t, d].
        # Product promotes to f32 via q (no materialized f32 copy of h);
        # multiply+reduce is guaranteed to lower on Mosaic (a degenerate
        # batched dot_general with no rhs free dim is not).
        scores = jnp.sum(h_ref[...] * q[:, None, :], axis=-1)      # (TB, S)

    out_ref[...] = jnp.tanh(scores).astype(out_ref.dtype)


def _chip_params():
    """(target h-tile bytes, tensorcores per chip) from the local device."""
    kind = ""
    try:
        kind = jax.devices()[0].device_kind.lower()
    except Exception:  # no device info available -> conservative defaults
        pass
    if "v7" in kind:
        return 8 << 20, 2          # big tiles amortize per-step overhead; 2 TCs
    if "v6" in kind:
        return 8 << 20, 1
    return 4 << 20, 1              # v5e / unknown: stay friendly to 16 MiB scoped


def _pick_batch_block(B, S, D, itemsize, target_bytes, num_cores):
    """Batch rows per grid step so each h tile is ~target_bytes.

    TB sits on the second-to-last dim of the q/out blocks, so it must be a
    multiple of 8 or equal the full batch B.  On 2-TC chips we also try to
    keep the grid step count even so ("parallel",) balances the cores.
    """
    row_bytes = S * D * itemsize
    tb = max(1, target_bytes // row_bytes)

    if tb >= B:
        if num_cores <= 1 or B <= 8:
            return B                        # single full-batch tile
        # Whole batch fits in one tile; split into exactly 2 blocks so both
        # TensorCores get work (last block may be partial -> masked stores).
        half = -(-B // 2)                   # ceil(B / 2)
        tb = -(-half // 8) * 8              # round up to a multiple of 8
        return B if tb >= B else tb

    tb = max(8, (tb // 8) * 8)              # round down to a multiple of 8
    if tb >= B:
        return B

    if num_cores > 1:
        steps = -(-B // tb)
        if steps > 1 and steps % 2 == 1:
            # Nudge to an even step count (small search over candidate counts).
            for ts in range(steps + 1, 2 * steps + 1):
                if ts % 2:
                    continue
                cand = max(8, -(-(-(-B // ts)) // 8) * 8)   # ceil(B/ts) -> x8 up
                if 0 < cand < B and -(-B // cand) == ts:
                    tb = cand
                    break
    return tb


def scoring_model_forward(h: jax.Array, q: jax.Array, *,
                          block_batch: int | None = None) -> jax.Array:
    """scores[b, s] = tanh( <h[b, s, :], q[b, :]> / sqrt(D) )"""
    B, S, D = h.shape
    assert q.shape == (B, D)
    inv_sqrt_dk = 1.0 / math.sqrt(D)
    itemsize = jnp.dtype(h.dtype).itemsize

    target_bytes, num_cores = _chip_params()
    if block_batch is not None:
        TB = min(int(block_batch), B)
    else:
        TB = _pick_batch_block(B, S, D, itemsize, target_bytes, num_cores)

    # Explicit scoped-VMEM budget: double-buffered h + q/out blocks + the f32
    # working set of the in-kernel reduction, plus generous margin.  Stays
    # well under v7x's 64 MiB physical VMEM.
    h_tile = TB * S * D * itemsize
    q_tile = TB * D * itemsize
    out_tile = TB * S * 4
    work_f32 = TB * S * min(D, 128) * 4 + TB * S * 8
    vmem_limit = int(min(56 << 20,
                         max(24 << 20,
                             2 * h_tile + 2 * (q_tile + out_tile)
                             + work_f32 + (8 << 20))))

    cost = pl.CostEstimate(
        flops=2 * B * S * D,
        transcendentals=B * S,
        bytes_accessed=B * S * D * itemsize + B * D * itemsize + B * S * 4,
    )

    kernel = functools.partial(_scoring_kernel, inv_sqrt_dk=inv_sqrt_dk)

    # NOTE: when B % TB != 0 the last grid step reads unspecified tail rows of
    # h/q and the tail rows of the (TB, S) output block are masked on store.
    # Safe here because tanh is bounded and there is no cross-step
    # accumulator; do NOT add a batch-direction reduction without revisiting.
    return pl.pallas_call(
        kernel,
        out_shape=jax.ShapeDtypeStruct((B, S), jnp.float32),
        grid_spec=pltpu.PrefetchScalarGridSpec(
            num_scalar_prefetch=0,
            grid=(pl.cdiv(B, TB),),
            in_specs=[
                # Full S, D extents per block -> contiguous HBM slabs and the
                # (8,128) rule is satisfied by "equal full dim".
                pl.BlockSpec((TB, S, D), lambda b: (b, 0, 0)),
                pl.BlockSpec((TB, D), lambda b: (b, 0)),
            ],
            out_specs=pl.BlockSpec((TB, S), lambda b: (b, 0)),
        ),
        compiler_params=pltpu.CompilerParams(
            dimension_semantics=("parallel",),
            vmem_limit_bytes=vmem_limit,
        ),
        cost_estimate=cost,
    )(h, q)


def _reference(h, q):
    return jnp.tanh(jnp.einsum("bsd,bd->bs", h, q) / math.sqrt(h.shape[-1]))


if __name__ == "__main__":
    key = jax.random.PRNGKey(0)
    k1, k2, k3, k4, k5, k6 = jax.random.split(key, 6)

    # 1) Small shapes implied by the module: batch=2, max_sen_len=8, vec_dim=32.
    B, S, D = 2, 8, 32
    h = jax.random.normal(k1, (B, S, D), dtype=jnp.float32)
    q = jax.random.normal(k2, (B, D), dtype=jnp.float32)
    out = scoring_model_forward(h, q)
    jax.block_until_ready(out)
    assert out.shape == (B, S)
    assert jnp.allclose(out, _reference(h, q), atol=1e-5, rtol=1e-5)

    # 2) Forced small batch block: multi-step grid with a partial last block
    #    (B=20, TB=8 -> grid=(3,); masked tail stores on the last step).
    B2 = 20
    h2 = jax.random.normal(k3, (B2, S, D), dtype=jnp.float32)
    q2 = jax.random.normal(k4, (B2, D), dtype=jnp.float32)
    out2 = scoring_model_forward(h2, q2, block_batch=8)
    jax.block_until_ready(out2)
    assert out2.shape == (B2, S)
    assert jnp.allclose(out2, _reference(h2, q2), atol=1e-5, rtol=1e-5)

    # 3) D a multiple of 128 (>128): exercises the VALU-chunked reduction path.
    B3, S3, D3 = 4, 8, 256
    h3 = jax.random.normal(k5, (B3, S3, D3), dtype=jnp.float32)
    q3 = jax.random.normal(k6, (B3, D3), dtype=jnp.float32)
    out3 = scoring_model_forward(h3, q3)
    jax.block_until_ready(out3)
    assert out3.shape == (B3, S3)
    assert jnp.allclose(out3, _reference(h3, q3), atol=1e-4, rtol=1e-4)

    print("KERNEL_OK")
</pallas_src>

<mosaic_0001>
module attributes {stable_mosaic.version = 11 : i64} {
  func.func @_scoring_kernel(%arg0: i32, %arg1: memref<2x8x32xf32, #tpu.memory_space<vmem>>, %arg2: memref<2x32xf32, #tpu.memory_space<vmem>>, %arg3: memref<2x8xf32, #tpu.memory_space<vmem>>) attributes {dimension_semantics = [#tpu.dimension_semantics<parallel>], iteration_bounds = array<i64: 1>, scalar_prefetch = 0 : i64, scratch_operands = 0 : i64, tpu.core_type = #tpu.core_type<tc>, window_params = [{transform_indices = @transform_0, window_bounds = array<i64: 2, 8, 32>}, {transform_indices = @transform_1, window_bounds = array<i64: 2, 32>}, {transform_indices = @transform_2, window_bounds = array<i64: 2, 8>}]} {
    %c0 = arith.constant 0 : index
    %c0_0 = arith.constant 0 : index
    %0 = vector.load %arg2[%c0, %c0_0] : memref<2x32xf32, #tpu.memory_space<vmem>>, vector<2x32xf32>
    %cst = arith.constant 0.176776692 : f32
    %1 = vector.broadcast %cst : f32 to vector<2x32xf32>
    %2 = arith.mulf %0, %1 : vector<2x32xf32>
    %c0_1 = arith.constant 0 : index
    %c0_2 = arith.constant 0 : index
    %c0_3 = arith.constant 0 : index
    %3 = vector.load %arg1[%c0_1, %c0_2, %c0_3] : memref<2x8x32xf32, #tpu.memory_space<vmem>>, vector<2x8x32xf32>
    %4 = vector.shape_cast %2 : vector<2x32xf32> to vector<2x1x32xf32>
    %5 = vector.broadcast %4 : vector<2x1x32xf32> to vector<2x8x32xf32>
    %6 = arith.mulf %3, %5 : vector<2x8x32xf32>
    %cst_4 = arith.constant dense<0.000000e+00> : vector<2x8xf32>
    %7 = vector.multi_reduction <add>, %6, %cst_4 [2] : vector<2x8x32xf32> to vector<2x8xf32>
    %8 = math.tanh %7 : vector<2x8xf32>
    %c0_5 = arith.constant 0 : index
    %c0_6 = arith.constant 0 : index
    %9 = vector.load %arg3[%c0_5, %c0_6] : memref<2x8xf32, #tpu.memory_space<vmem>>, vector<2x8xf32>
    tpu.vector_store %arg3[%c0_5, %c0_6], %8 {strides = array<i32>} : memref<2x8xf32, #tpu.memory_space<vmem>>, vector<2x8xf32>,
    return
  }
  func.func @transform_0(%arg0: i32) -> (i32, i32, i32) {
    %c0_i32 = arith.constant 0 : i32
    %c0_i32_0 = arith.constant 0 : i32
    %c0_i32_1 = arith.constant 0 : i32
    return %arg0, %c0_i32, %c0_i32_0 : i32, i32, i32
  }
  func.func @transform_1(%arg0: i32) -> (i32, i32) {
    %c0_i32 = arith.constant 0 : i32
    %c0_i32_0 = arith.constant 0 : i32
    return %arg0, %c0_i32 : i32, i32
  }
  func.func @transform_2(%arg0: i32) -> (i32, i32) {
    %c0_i32 = arith.constant 0 : i32
    %c0_i32_0 = arith.constant 0 : i32
    return %arg0, %c0_i32 : i32, i32
  }
}

</mosaic_0001>

<llo_original>
// kernel: tpu_custom_call.1
$region0: #{tpu_custom_call.1}
  #allocation0 [shape = 'u32[]', space=smem, size = 0x4, offset = 0x4, fixed_abs, tag = 'smem constant byte address 0x4 - core index']
  #allocation1 [shape = 'u32[144,128]{1,0:T(1,128)}', space=vmem, size = 0x12000, scoped, tag = 'internal scratch']
  %s0 = inlined_call_operand.hbm [shape: f32[2,8,32], index: 0, kind: input, shape index: {}]
  %s1 = inlined_call_operand.vmem [shape: f32[2,32], index: 1, kind: input, shape index: {}]
  %s2 = inlined_call_operand.hbm [shape: f32[2,8], index: 2, kind: output, shape index: {}]
  %s3 = sld [smem:[#allocation0]]
  $region22: #{tpu_custom_call.1} parent=0
    _
  %s5 = ssub.s32 1, %s3
  %s6 = scalar_select 0, %s5, %s3
  $region1: #{tpu_custom_call.1} parent=0
    #allocation2 [shape = 'u8[8192]{0}', space=vmem, size = 0x2000, scoped, tag = 'input window, operand 0, single buffered']
    #allocation3 [shape = 's32[1]{0}', space=sflag, size = 0x4, scoped, tag = 'scoped memory for tpu_custom_call.1']
    #allocation4 [shape = 's32[1]{0}', space=sflag, size = 0x4, scoped, tag = 'scoped memory for tpu_custom_call.1']
    #allocation5 [shape = 'u8[1024]{0}', space=vmem, size = 0x400, scoped, tag = 'output window, operand 0, single buffered']
    %7 = vsyncpa [#allocation3], 0
    %8 = vsyncpa [#allocation4], 0
    // Predicated region
    $region2: #{tpu_custom_call.1} parent=1 // pred_check
      _
    $region3: #{tpu_custom_call.1} parent=1 // pred_check_branch
      %10 = sbr.rel (0) target = $region5
    $region4: #{tpu_custom_call.1} parent=1 // pred_region
      %s12 = ssub.s32 256, 256
      %13 = vsyncadd [#allocation3], %s12
      %s14 = sshll.u32 [#allocation2], 4
      %s15 = int_to_ptr.vmem [resolvable:$true] %s14
      %20 = dma.hbm_to_vmem [thread:$0]  %s0, 256, %s15, [#allocation3], 128, 128, 8
    $region5: #{tpu_custom_call.1} parent=1 // pred_fallthru
      _
    // Predicated region
    $region6: #{tpu_custom_call.1} parent=1 // pred_check
      _
    $region7: #{tpu_custom_call.1} parent=1 // pred_check_branch
      %22 = sbr.rel (0) target = $region9
    $region8: #{tpu_custom_call.1} parent=1 // pred_region
      _
    $region9: #{tpu_custom_call.1} parent=1 // pred_fallthru
      _
    // Predicated region
    $region10: #{tpu_custom_call.1} parent=1 // pred_check
      _
    $region11: #{tpu_custom_call.1} parent=1 // pred_check_branch
      %24 = sbr.rel (0) target = $region13
    $region12: #{tpu_custom_call.1} parent=1 // pred_region
      %25 = dma.done [#allocation3], 256
    $region13: #{tpu_custom_call.1} parent=1 // pred_fallthru
      _
    %v26 = vld [vmem:[%s1] sm:$0x3]
    %v27 = vmul.f32 %v26, 0.17677669
    %v28 = vld [vmem:[#allocation2] sm:$0xff]
    %v29 = vld [vmem:[#allocation2 + $0x8] sm:$0xff]
    %v32 = vunpack.c.l.s4 1966171168
    %v33 = vunpack.c.0.s8 %v32
    %v34 = vlaneseq
    %v35 = vshrl.u32 %v34, 7
    %v36 = vsub.s32 %v33, %v35
    %v37 = vrot.slane %v27, %v36
    %v38 = vcombine.high %v37, %v37
    %v40 = vunpack.c.l.s4 1966171168
    %v41 = vunpack.c.0.s8 %v40
    %v42 = vlaneseq
    %v43 = vshrl.u32 %v42, 7
    %v44 = vsub.s32 %v41, %v43
    %v45 = vrot.slane %v37, %v44
    %v47 = vunpack.c.l.s4 1966171168
    %v48 = vunpack.c.0.s8 %v47
    %v49 = vlaneseq
    %v50 = vshrl.u32 %v49, 7
    %v51 = vsub.s32 %v48, %v50
    %v52 = vrot.slane %v38, %v51
    %v53 = vlaneseq
    %v54 = vshrl.u32 %v53, 7
    %v55 = vsub.s32 0, %v54
    %v56 = vrot.slane %v45, %v55
    %v57 = vlaneseq
    %v58 = vshrl.u32 %v57, 7
    %v59 = vsub.s32 0, %v58
    %v60 = vrot.slane %v52, %v59
    %v63 = vmul.f32 %v28, %v56
    %v64 = vmul.f32 %v29, %v60
    %vm65 = vcmask 261120
    %v66 = vsel %vm65, %v63, 0.0
    %67 = vadd.xlane.f32.xlu0 %v66
    %v68 = vpop.xlane.xlu0 %67
    %v69 = vsel %vm65, %v64, 0.0
    %70 = vadd.xlane.f32.xlu0 %v69
    %v71 = vpop.xlane.xlu0 %70
    %v72 = vtanh.pop %v68
    %v73 = vtanh.pop %v71
    %v76 = vlaneseq
    %v77 = vand.u32 %v76, 127
    %v78 = vlaneseq
    %v79 = vshrl.u32 %v78, 7
    %v80 = vsub.s32 %v77, %v79
    %v81 = vrot.slane %v72, %v80
    %v82 = vlaneseq
    %v83 = vshrl.u32 %v82, 7
    %v84 = vsub.s32 %v77, %v83
    %v85 = vrot.slane %v73, %v84
    %vm86 = vcmask 1041409
    %v87 = vsel %vm86, %v85, %v81
    %vm89 = vcmask 58368
    %90 = vst.msk [vmem:[#allocation5] sm:$0x3] %vm89, %v87
    // Predicated region
    $region14: #{tpu_custom_call.1} parent=1 // pred_check
      _
    $region15: #{tpu_custom_call.1} parent=1 // pred_check_branch
      %92 = sbr.rel (0) target = $region17
    $region16: #{tpu_custom_call.1} parent=1 // pred_region
      %s94 = ssub.s32 32, 32
      %95 = vsyncadd [#allocation4], %s94
      %s97 = sshll.u32 [#allocation5], 4
      %s98 = int_to_ptr.vmem [resolvable:$true] %s97
      %100 = dma.vmem_to_hbm [thread:$0]  %s98, 32, %s2, [#allocation4]
    $region17: #{tpu_custom_call.1} parent=1 // pred_fallthru
      _
    // Predicated region
    $region18: #{tpu_custom_call.1} parent=1 // pred_check
      _
    $region19: #{tpu_custom_call.1} parent=1 // pred_check_branch
      %102 = sbr.rel (0) target = $region21
    $region20: #{tpu_custom_call.1} parent=1 // pred_region
      %103 = dma.done [#allocation4], 32
    $region21: #{tpu_custom_call.1} parent=1 // pred_fallthru
      _
    %104 = vsyncpa [#allocation3], 1
    %105 = vsyncpa [#allocation4], 1

</llo_original>
